<compile_context>
chip_gen: v5e
topology: v5e:2x2
jax: 0.10.0
libtpu: 0.0.40
codegen_flags: <defaults>
</compile_context>

<pallas_src>
import jax
import jax.numpy as jnp
from jax.experimental import pallas as pl
from jax.experimental.pallas import tpu as pltpu

_LANES = 128          # batch maps to the lane axis in the transposed layout
_MAX_TB = 32768       # keeps double-buffered tiles << 16 MiB scoped VMEM (v5e)


def _cdiv(a, b):
    return -(-a // b)


def _round_up(n, m):
    return _cdiv(n, m) * m


def mlp_fused_kernel(xT_ref, waT_ref, baT_ref, wbT_ref, bbT_ref, oT_ref):
    # h^T = Wa^T @ x^T : (32, d_in) @ (d_in, TB) -> (32, TB), f32 MXU accumulation.
    h = jnp.dot(waT_ref[...], xT_ref[...], preferred_element_type=jnp.float32)
    h = jnp.maximum(h + baT_ref[...], 0.0)              # bias + the single ReLU
    # y^T = Wb^T @ h^T : (7, 32) @ (32, TB) -> (7, TB).  Wb is tiny; keep f32.
    y = jnp.dot(wbT_ref[...].astype(jnp.float32), h,
                preferred_element_type=jnp.float32) + bbT_ref[...]
    oT_ref[...] = y.astype(oT_ref.dtype)


def fuse_params(params, matmul_dtype=jnp.float32):
    """Collapse linear1..linear5 around the single ReLU into two affine maps,
    returned transposed (out, in) / (out, 1) for the lane-dense kernel."""
    (w1, b1), (w2, b2), (w3, b3), (w4, b4), (w5, b5) = params
    wa = w1 @ w2                               # (in, 32)
    ba = b1 @ w2 + b2                          # (1, 32)
    wb = (w3 @ w4) @ w5                        # (32, 7)
    bb = ((b3 @ w4) + b4) @ w5 + b5            # (1, 7)
    # Matmul operands follow the activation dtype; biases stay f32 (f32 VPU add).
    return (wa.T.astype(matmul_dtype), ba.T.astype(jnp.float32),
            wb.T.astype(matmul_dtype), bb.T.astype(jnp.float32))


def mlp_forward(x, params, *, block_rows=8192, x_dtype=None, core_parallel=False):
    """x: (B, input_dim) float. params: list of (W, b) with W stored as (in, out).

    block_rows:    target rows per grid step (rounded to the 128-lane width).
    x_dtype:       e.g. jnp.bfloat16 to halve input HBM traffic (f32 accumulation
                   is preserved; expect bf16-level output error).
    core_parallel: set True on v7x to shard row tiles across both TensorCores.
    """
    B, d_in = x.shape
    x_dtype = jnp.dtype(x_dtype) if x_dtype is not None else x.dtype
    waT, baT, wbT, bbT = fuse_params(params, matmul_dtype=x_dtype)
    d_hid = waT.shape[0]
    d_out = wbT.shape[0]

    # Tile sizing: lane-aligned, capped, and derived from cdiv(B, num_tiles) so
    # the final tile carries minimal padding (no fixed-512 blow-up).
    eff = max(_LANES, min(block_rows, _MAX_TB))
    num_tiles = _cdiv(B, eff)
    tb = _round_up(_cdiv(B, num_tiles), _LANES)
    bp = num_tiles * tb

    # One-time layout work off the hot loop: cast, pad the batch, transpose so
    # the batch dimension is the (lane-dense) last axis.  Downstream code that
    # can consume (d_out, B) directly can skip the final transpose.
    xc = x.astype(x_dtype)
    if bp != B:
        xc = jnp.pad(xc, ((0, bp - B), (0, 0)))
    xT = xc.T                                   # (d_in, bp)

    itemsize = jnp.dtype(x_dtype).itemsize
    cost = pl.CostEstimate(
        flops=2 * bp * (d_in * d_hid + d_hid * d_out),
        transcendentals=0,
        bytes_accessed=bp * (d_in * itemsize + d_out * 4)
        + (waT.size + wbT.size) * itemsize + (baT.size + bbT.size) * 4,
    )

    sem = (pltpu.CORE_PARALLEL,) if core_parallel else (pltpu.PARALLEL,)

    yT = pl.pallas_call(
        mlp_fused_kernel,
        out_shape=jax.ShapeDtypeStruct((d_out, bp), jnp.float32),
        grid=(num_tiles,),
        in_specs=[
            pl.BlockSpec((d_in, tb), lambda i: (0, i)),     # x^T: pipelined tiles
            pl.BlockSpec((d_hid, d_in), lambda i: (0, 0)),  # Wa^T: VMEM-resident
            pl.BlockSpec((d_hid, 1), lambda i: (0, 0)),     # ba^T
            pl.BlockSpec((d_out, d_hid), lambda i: (0, 0)), # Wb^T
            pl.BlockSpec((d_out, 1), lambda i: (0, 0)),     # bb^T
        ],
        out_specs=pl.BlockSpec((d_out, tb), lambda i: (0, i)),
        compiler_params=pltpu.CompilerParams(dimension_semantics=sem),
        cost_estimate=cost,
    )(xT, waT, baT, wbT, bbT)
    # TODO(synk): if DMA is still exposed at very small d_in, pipeline_mode=
    # pl.Buffered(3) on the x^T spec is the next (minor) lever.

    out = yT[:, :B].T                           # (B, d_out)
    return out


def init_params(key, input_dim, output_dim):
    """Deterministic init mirroring nn.Linear shapes (stored as (in, out))."""
    dims = [input_dim, 64, 32, 16, 8, output_dim]
    params = []
    for i in range(len(dims) - 1):
        fan_in, fan_out = dims[i], dims[i + 1]
        key, kw, kb = jax.random.split(key, 3)
        bound = 1.0 / jnp.sqrt(jnp.float32(fan_in))
        w = jax.random.uniform(kw, (fan_in, fan_out), jnp.float32, -bound, bound)
        b = jax.random.uniform(kb, (1, fan_out), jnp.float32, -bound, bound)
        params.append((w, b))
    return params


def reference_forward(x, params):
    h = x @ params[0][0] + params[0][1]
    h = h @ params[1][0] + params[1][1]
    h = jnp.maximum(h, 0.0)
    h = h @ params[2][0] + params[2][1]
    h = h @ params[3][0] + params[3][1]
    h = h @ params[4][0] + params[4][1]
    return h


if __name__ == "__main__":
    key = jax.random.PRNGKey(0)
    input_dim, output_dim = 16, 7
    kx, kp, kx2 = jax.random.split(key, 3)
    params = init_params(kp, input_dim, output_dim)

    # Small batch: single grid step, tile padded up to one lane width (128).
    x = jax.random.normal(kx, (8, input_dim), jnp.float32)
    out = mlp_forward(x, params)
    jax.block_until_ready(out)
    ref = reference_forward(x, params)
    assert out.shape == (8, output_dim)
    assert jnp.allclose(out, ref, atol=1e-4, rtol=1e-4)

    # Non-multiple batch with a small block_rows to force a multi-step grid and
    # the minimal-padding tile sizing (1031 rows -> 3 tiles of 384).
    x2 = jax.random.normal(kx2, (1031, input_dim), jnp.float32)
    out2 = mlp_forward(x2, params, block_rows=384)
    jax.block_until_ready(out2)
    ref2 = reference_forward(x2, params)
    assert out2.shape == (1031, output_dim)
    assert jnp.allclose(out2, ref2, atol=1e-4, rtol=1e-4)

    # bf16-activation bandwidth path (f32 accumulation) -> looser tolerance.
    out3 = mlp_forward(x2, params, x_dtype=jnp.bfloat16)
    jax.block_until_ready(out3)
    assert out3.shape == (1031, output_dim)
    assert jnp.allclose(out3, ref2, atol=5e-2, rtol=5e-2)

    print("KERNEL_OK")
</pallas_src>

<mosaic_0001>
module attributes {stable_mosaic.version = 11 : i64} {
  func.func @mlp_fused_kernel(%arg0: i32, %arg1: memref<16x128xf32, #tpu.memory_space<vmem>>, %arg2: memref<32x16xf32, #tpu.memory_space<vmem>>, %arg3: memref<32x1xf32, #tpu.memory_space<vmem>>, %arg4: memref<7x32xf32, #tpu.memory_space<vmem>>, %arg5: memref<7x1xf32, #tpu.memory_space<vmem>>, %arg6: memref<7x128xf32, #tpu.memory_space<vmem>>) attributes {dimension_semantics = [#tpu.dimension_semantics<parallel>], iteration_bounds = array<i64: 1>, scalar_prefetch = 0 : i64, scratch_operands = 0 : i64, tpu.core_type = #tpu.core_type<tc>, window_params = [{transform_indices = @transform_0, window_bounds = array<i64: 16, 128>}, {pipeline_mode = #tpu.pipeline_mode<synchronous>, transform_indices = @transform_1, window_bounds = array<i64: 32, 16>}, {pipeline_mode = #tpu.pipeline_mode<synchronous>, transform_indices = @transform_2, window_bounds = array<i64: 32, 1>}, {pipeline_mode = #tpu.pipeline_mode<synchronous>, transform_indices = @transform_3, window_bounds = array<i64: 7, 32>}, {pipeline_mode = #tpu.pipeline_mode<synchronous>, transform_indices = @transform_4, window_bounds = array<i64: 7, 1>}, {transform_indices = @transform_5, window_bounds = array<i64: 7, 128>}]} {
    %c0 = arith.constant 0 : index
    %c0_0 = arith.constant 0 : index
    %0 = vector.load %arg2[%c0, %c0_0] : memref<32x16xf32, #tpu.memory_space<vmem>>, vector<32x16xf32>
    %c0_1 = arith.constant 0 : index
    %c0_2 = arith.constant 0 : index
    %1 = vector.load %arg1[%c0_1, %c0_2] : memref<16x128xf32, #tpu.memory_space<vmem>>, vector<16x128xf32>
    %cst = arith.constant dense<0.000000e+00> : vector<32x128xf32>
    %2 = tpu.matmul %0, %1, %cst {dimension_numbers = #tpu.dot_dimension_numbers<[1], [0], [0], [1], [0, 0, 1, 1], [], []>} : vector<32x16xf32>, vector<16x128xf32>, vector<32x128xf32> -> vector<32x128xf32>
    %c0_3 = arith.constant 0 : index
    %c0_4 = arith.constant 0 : index
    %3 = vector.load %arg3[%c0_3, %c0_4] : memref<32x1xf32, #tpu.memory_space<vmem>>, vector<32x1xf32>
    %4 = vector.broadcast %3 : vector<32x1xf32> to vector<32x128xf32>
    %5 = arith.addf %2, %4 : vector<32x128xf32>
    %cst_5 = arith.constant 0.000000e+00 : f32
    %6 = vector.broadcast %cst_5 : f32 to vector<32x128xf32>
    %7 = arith.maximumf %5, %6 : vector<32x128xf32>
    %c0_6 = arith.constant 0 : index
    %c0_7 = arith.constant 0 : index
    %8 = vector.load %arg4[%c0_6, %c0_7] : memref<7x32xf32, #tpu.memory_space<vmem>>, vector<7x32xf32>
    %cst_8 = arith.constant dense<0.000000e+00> : vector<7x128xf32>
    %9 = tpu.matmul %8, %7, %cst_8 {dimension_numbers = #tpu.dot_dimension_numbers<[1], [0], [0], [1], [0, 0, 1, 1], [], []>} : vector<7x32xf32>, vector<32x128xf32>, vector<7x128xf32> -> vector<7x128xf32>
    %c0_9 = arith.constant 0 : index
    %c0_10 = arith.constant 0 : index
    %10 = vector.load %arg5[%c0_9, %c0_10] : memref<7x1xf32, #tpu.memory_space<vmem>>, vector<7x1xf32>
    %11 = vector.broadcast %10 : vector<7x1xf32> to vector<7x128xf32>
    %12 = arith.addf %9, %11 : vector<7x128xf32>
    %c0_11 = arith.constant 0 : index
    %c0_12 = arith.constant 0 : index
    %13 = vector.load %arg6[%c0_11, %c0_12] : memref<7x128xf32, #tpu.memory_space<vmem>>, vector<7x128xf32>
    tpu.vector_store %arg6[%c0_11, %c0_12], %12 {strides = array<i32>} : memref<7x128xf32, #tpu.memory_space<vmem>>, vector<7x128xf32>,
    return
  }
  func.func @transform_0(%arg0: i32) -> (i32, i32) {
    %c0_i32 = arith.constant 0 : i32
    %c0_i32_0 = arith.constant 0 : i32
    return %c0_i32, %arg0 : i32, i32
  }
  func.func @transform_1(%arg0: i32) -> (i32, i32) {
    %c0_i32 = arith.constant 0 : i32
    %c0_i32_0 = arith.constant 0 : i32
    %c0_i32_1 = arith.constant 0 : i32
    return %c0_i32, %c0_i32_0 : i32, i32
  }
  func.func @transform_2(%arg0: i32) -> (i32, i32) {
    %c0_i32 = arith.constant 0 : i32
    %c0_i32_0 = arith.constant 0 : i32
    %c0_i32_1 = arith.constant 0 : i32
    return %c0_i32, %c0_i32_0 : i32, i32
  }
  func.func @transform_3(%arg0: i32) -> (i32, i32) {
    %c0_i32 = arith.constant 0 : i32
    %c0_i32_0 = arith.constant 0 : i32
    %c0_i32_1 = arith.constant 0 : i32
    return %c0_i32, %c0_i32_0 : i32, i32
  }
  func.func @transform_4(%arg0: i32) -> (i32, i32) {
    %c0_i32 = arith.constant 0 : i32
    %c0_i32_0 = arith.constant 0 : i32
    %c0_i32_1 = arith.constant 0 : i32
    return %c0_i32, %c0_i32_0 : i32, i32
  }
  func.func @transform_5(%arg0: i32) -> (i32, i32) {
    %c0_i32 = arith.constant 0 : i32
    %c0_i32_0 = arith.constant 0 : i32
    return %c0_i32, %arg0 : i32, i32
  }
}

</mosaic_0001>

<llo_original>
// kernel: tpu_custom_call.1
$region0: #{tpu_custom_call.1}
  #allocation0 [shape = 'u32[]', space=smem, size = 0x4, offset = 0x4, fixed_abs, tag = 'smem constant byte address 0x4 - core index']
  #allocation1 [shape = 'u32[72,128]{1,0:T(1,128)}', space=vmem, size = 0x9000, scoped, tag = 'internal scratch']
  %s0 = inlined_call_operand.vmem [shape: f32[16,128], index: 0, kind: input, shape index: {}]
  %s1 = inlined_call_operand.vmem [shape: f32[32,16], index: 1, kind: input, shape index: {}]
  %s2 = inlined_call_operand.vmem [shape: f32[32,1], index: 2, kind: input, shape index: {}]
  %s3 = inlined_call_operand.vmem [shape: f32[7,32], index: 3, kind: input, shape index: {}]
  %s4 = inlined_call_operand.vmem [shape: f32[7,1], index: 4, kind: input, shape index: {}]
  %s5 = inlined_call_operand.hbm [shape: f32[7,128], index: 5, kind: output, shape index: {}]
  %s6 = sld [smem:[#allocation0]]
  $region30: #{tpu_custom_call.1} parent=0
    _
  %s8 = ssub.s32 1, %s6
  %s9 = scalar_select 0, %s8, %s6
  $region1: #{tpu_custom_call.1} parent=0
    #allocation2 [shape = 'u8[4096]{0}', space=vmem, size = 0x1000, scoped, tag = 'output window, operand 0, single buffered']
    #allocation3 [shape = 's32[1]{0}', space=sflag, size = 0x4, scoped, tag = 'scoped memory for tpu_custom_call.1']
    %10 = vsyncpa [#allocation3], 0
    // Predicated region
    $region2: #{tpu_custom_call.1} parent=1 // pred_check
      _
    $region3: #{tpu_custom_call.1} parent=1 // pred_check_branch
      %12 = sbr.rel (0) target = $region5
    $region4: #{tpu_custom_call.1} parent=1 // pred_region
      _
    $region5: #{tpu_custom_call.1} parent=1 // pred_fallthru
      _
    // Predicated region
    $region6: #{tpu_custom_call.1} parent=1 // pred_check
      _
    $region7: #{tpu_custom_call.1} parent=1 // pred_check_branch
      %14 = sbr.rel (0) target = $region9
    $region8: #{tpu_custom_call.1} parent=1 // pred_region
      _
    $region9: #{tpu_custom_call.1} parent=1 // pred_fallthru
      _
    // Predicated region
    $region10: #{tpu_custom_call.1} parent=1 // pred_check
      _
    $region11: #{tpu_custom_call.1} parent=1 // pred_check_branch
      %16 = sbr.rel (0) target = $region13
    $region12: #{tpu_custom_call.1} parent=1 // pred_region
      _
    $region13: #{tpu_custom_call.1} parent=1 // pred_fallthru
      _
    // Predicated region
    $region14: #{tpu_custom_call.1} parent=1 // pred_check
      _
    $region15: #{tpu_custom_call.1} parent=1 // pred_check_branch
      %18 = sbr.rel (0) target = $region17
    $region16: #{tpu_custom_call.1} parent=1 // pred_region
      _
    $region17: #{tpu_custom_call.1} parent=1 // pred_fallthru
      _
    // Predicated region
    $region18: #{tpu_custom_call.1} parent=1 // pred_check
      _
    $region19: #{tpu_custom_call.1} parent=1 // pred_check_branch
      %20 = sbr.rel (0) target = $region21
    $region20: #{tpu_custom_call.1} parent=1 // pred_region
      _
    $region21: #{tpu_custom_call.1} parent=1 // pred_fallthru
      _
    %v21 = vld [vmem:[%s1] sm:$0xff]
    %v22 = vld [vmem:[%s1 + $0x8] sm:$0xff]
    %v23 = vld [vmem:[%s1 + $0x10] sm:$0xff]
    %v24 = vld [vmem:[%s1 + $0x18] sm:$0xff]
    %v25 = vld [vmem:[%s0] sm:$0xff]
    %v26 = vld [vmem:[%s0 + $0x8] sm:$0xff]
    %v27 = vld [vmem:[%s2] sm:$0xff]
    %v28 = vld [vmem:[%s2 + $0x8] sm:$0xff]
    %v29 = vld [vmem:[%s2 + $0x10] sm:$0xff]
    %v30 = vld [vmem:[%s2 + $0x18] sm:$0xff]
    %32 = vset.pattern.permute.xlu0 0
    %33 = vperm.xlu0 %32, %v27
    %v34 = vpop.permute.xlu0 %33
    %37 = vset.pattern.permute.xlu0 0
    %38 = vperm.xlu0 %37, %v28
    %v39 = vpop.permute.xlu0 %38
    %42 = vset.pattern.permute.xlu0 0
    %43 = vperm.xlu0 %42, %v29
    %v44 = vpop.permute.xlu0 %43
    %47 = vset.pattern.permute.xlu0 0
    %48 = vperm.xlu0 %47, %v30
    %v49 = vpop.permute.xlu0 %48
    %vm51 = vcmask 130048
    %v53 = vsel %vm51, %v21, 0
    %v56 = vsel %vm51, %v22, 0
    %v59 = vsel %vm51, %v23, 0
    %v62 = vsel %vm51, %v24, 0
    %64 = vmatpush.msra.mxu0 0.0
    %65 = vmatpush.msra.mxu0 0.0
    %66 = vmatpush.msra.mxu0 0.0
    %67 = vmatpush.msra.mxu0 0.0
    %68 = vmatpush.msra.mxu0 0.0
    %69 = vmatpush.msra.mxu0 0.0
    %70 = vmatpush.msra.mxu0 0.0
    %71 = vmatpush.msra.mxu0 0.0
    %72 = vmatpush.msra.mxu0 0.0
    %73 = vmatpush.msra.mxu0 0.0
    %74 = vmatpush.msra.mxu0 0.0
    %75 = vmatpush.msra.mxu0 0.0
    %76 = vmatpush.msra.mxu0 0.0
    %77 = vmatpush.msra.mxu0 0.0
    %78 = vmatpush.msra.mxu0 %v26
    %79 = vmatpush.msra.mxu0 %v25
    %80 = vmatmul.f32.gmra.mxu0 %v53
    %v81 = vpop.f32.mrf.mxu0
    %v82 = vadd.f32 %v34, %v81
    %83 = vmatmul.f32.gmra.mxu0 %v56
    %v84 = vpop.f32.mrf.mxu0
    %v85 = vadd.f32 %v39, %v84
    %86 = vmatmul.f32.gmra.mxu0 %v59
    %v87 = vpop.f32.mrf.mxu0
    %v88 = vadd.f32 %v44, %v87
    %89 = vmatmul.f32.gmra.mxu0 %v62
    %v90 = vpop.f32.mrf.mxu0
    %v91 = vadd.f32 %v49, %v90
    %92 = vdwg.mxu0
    %v93 = vmax.f32 %v82, 0.0
    %v94 = vmax.f32 %v85, 0.0
    %v95 = vmax.f32 %v88, 0.0
    %v96 = vmax.f32 %v91, 0.0
    %v97 = vld [vmem:[%s3] sm:$0x7f]
    %v98 = vld [vmem:[%s4] sm:$0x7f]
    %100 = vset.pattern.permute.xlu0 0
    %101 = vperm.xlu0 %100, %v98
    %v102 = vpop.permute.xlu0 %101
    %vm104 = vcmask 261120
    %v106 = vsel %vm104, %v97, 0
    %108 = vmatpush.msra.mxu0 0.0
    %109 = vmatpush.msra.mxu0 0.0
    %110 = vmatpush.msra.mxu0 0.0
    %111 = vmatpush.msra.mxu0 0.0
    %112 = vmatpush.msra.mxu0 0.0
    %113 = vmatpush.msra.mxu0 0.0
    %114 = vmatpush.msra.mxu0 0.0
    %115 = vmatpush.msra.mxu0 0.0
    %116 = vmatpush.msra.mxu0 0.0
    %117 = vmatpush.msra.mxu0 0.0
    %118 = vmatpush.msra.mxu0 0.0
    %119 = vmatpush.msra.mxu0 0.0
    %120 = vmatpush.msra.mxu0 %v96
    %121 = vmatpush.msra.mxu0 %v95
    %122 = vmatpush.msra.mxu0 %v94
    %123 = vmatpush.msra.mxu0 %v93
    %124 = vmatmul.f32.gmra.mxu0 %v106
    %v125 = vpop.f32.mrf.mxu0
    %v126 = vadd.f32 %v102, %v125
    %127 = vdwg.mxu0
    %128 = vst [vmem:[#allocation2] sm:$0x7f] %v126
    // Predicated region
    $region22: #{tpu_custom_call.1} parent=1 // pred_check
      _
    $region23: #{tpu_custom_call.1} parent=1 // pred_check_branch
      %130 = sbr.rel (0) target = $region25
    $region24: #{tpu_custom_call.1} parent=1 // pred_region
      %132 = vsyncadd [#allocation3], 0
      %s134 = sshll.u32 [#allocation2], 4
      %s135 = int_to_ptr.vmem [resolvable:$true] %s134
      %s136 = sshll.u32 %s5, 4
      %s137 = int_to_ptr.hbm [resolvable:$true] %s136
      %139 = dma.vmem_to_hbm [thread:$0]  %s135, 128, %s137, [#allocation3]
    $region25: #{tpu_custom_call.1} parent=1 // pred_fallthru
      _
    // Predicated region
    $region26: #{tpu_custom_call.1} parent=1 // pred_check
      _
    $region27: #{tpu_custom_call.1} parent=1 // pred_check_branch
      %141 = sbr.rel (0) target = $region29
    $region28: #{tpu_custom_call.1} parent=1 // pred_region
      %143 = dma.done [#allocation3], 128
    $region29: #{tpu_custom_call.1} parent=1 // pred_fallthru
      _
    %144 = vsyncpa [#allocation3], 1

</llo_original>
